<compile_context>
chip_gen: v7x
topology: tpu7x:2x2x1
jax: 0.10.0
libtpu: 0.0.40
codegen_flags: <defaults>
</compile_context>

<pallas_src>
import functools

import jax
import jax.numpy as jnp
from jax import lax
from jax.experimental import pallas as pl
from jax.experimental.pallas import tpu as pltpu


def _conv_stats_kernel(p_ref, w_ref, conv_ref, st_ref):
    """One (n, hw-tile) step: conv as a single MXU contraction + BN partial stats.

    p_ref    : (K, bhw)   im2col patch tile (K = KH*KW*C on sublanes, HW on lanes)
    w_ref    : (F, K)     reordered conv weights
    conv_ref : (F, bhw)   unnormalized conv output tile (lane-dense store)
    st_ref   : (F, 2)     per-tile [sum, sum_of_squares] over the HW lanes
    """
    acc = jnp.dot(w_ref[...], p_ref[...], preferred_element_type=jnp.float32)  # (F, bhw)
    conv_ref[...] = acc
    s = jnp.sum(acc, axis=1, keepdims=True)            # (F, 1) lane reduction
    ss = jnp.sum(acc * acc, axis=1, keepdims=True)     # (F, 1)
    st_ref[...] = jnp.concatenate([s, ss], axis=1)     # (F, 2)


def _bn_lrelu_kernel(conv_ref, sc_ref, sh_ref, o_ref, *, neg_slope):
    """Fused affine BatchNorm (precomputed scale/shift) + LeakyReLU on an (F, bhw) tile."""
    y = conv_ref[...] * sc_ref[...] + sh_ref[...]      # (F, bhw), per-F scale/shift broadcast
    o_ref[...] = jnp.where(y > 0, y, neg_slope * y)


def _pick_block(total, cap=512):
    """Largest 128-aligned tile <= cap that divides `total` (or the full extent)."""
    if total <= cap:
        return total
    t = (cap // 128) * 128
    while t >= 128:
        if total % t == 0:
            return t
        t -= 128
    return total  # no aligned divisor: fall back to full residency


def entry_block_forward(x_nchw, w_oihw, conv_bias, gamma, beta, *,
                        padding, dilation, eps=1e-5, neg_slope=0.01, block_hw=None):
    """EntryBlock forward. Input / output use the PyTorch NCHW convention."""
    N, C, H, W = x_nchw.shape
    F, C_in, KH, KW = w_oihw.shape
    assert C_in == C

    H_out = H + 2 * padding - dilation * (KH - 1)
    W_out = W + 2 * padding - dilation * (KW - 1)
    HW = H_out * W_out
    K = KH * KW * C
    M = N * HW
    f32 = jnp.float32

    # ---- wrapper-side im2col (tap-major, channel-minor) -------------------------------
    # TODO(synk): at a real model boundary the zero-pad + im2col should be fused into the
    # kernel (shifted pl.ds windows on an NHWC-resident input) instead of XLA ops per call.
    x = x_nchw.astype(f32)
    x_pad = jnp.pad(x, ((0, 0), (0, 0), (padding, padding), (padding, padding)))
    cols = []
    for kh in range(KH):
        for kw in range(KW):
            h0, w0 = kh * dilation, kw * dilation
            win = lax.slice(x_pad, (0, 0, h0, w0), (N, C, h0 + H_out, w0 + W_out))
            cols.append(win.reshape(N, C, HW))
    patches = jnp.concatenate(cols, axis=1)                                   # (N, K, HW)
    w2 = jnp.transpose(w_oihw, (0, 2, 3, 1)).reshape(F, K).astype(f32)        # (F, K)

    bhw = block_hw if block_hw is not None else _pick_block(HW)
    n_hw = HW // bhw if HW % bhw == 0 else 1
    if HW % bhw != 0:
        bhw = HW

    parallel2 = pltpu.CompilerParams(dimension_semantics=("parallel", "parallel"))

    # ---- pass 1: conv + per-tile BN partial statistics --------------------------------
    conv_flat, stat_parts = pl.pallas_call(
        _conv_stats_kernel,
        out_shape=(jax.ShapeDtypeStruct((N, F, HW), f32),
                   jax.ShapeDtypeStruct((N, n_hw, F, 2), f32)),
        grid=(N, n_hw),
        in_specs=[pl.BlockSpec((None, K, bhw), lambda n, t: (n, 0, t)),
                  pl.BlockSpec((F, K), lambda n, t: (0, 0))],
        out_specs=(pl.BlockSpec((None, F, bhw), lambda n, t: (n, 0, t)),
                   pl.BlockSpec((None, None, F, 2), lambda n, t: (n, t, 0, 0))),
        compiler_params=parallel2,
    )(patches, w2)

    # ---- finalize BN stats (tiny: F x 2 elements) --------------------------------------
    # Conv bias intentionally omitted from the kernel: BN's mean subtraction cancels it.
    del conv_bias
    stats = jnp.sum(stat_parts, axis=(0, 1))                 # (F, 2)
    inv_m = 1.0 / float(M)
    mean = stats[:, 0:1] * inv_m
    var = stats[:, 1:2] * inv_m - mean * mean                # biased variance (training BN)
    scale = gamma.reshape(F, 1).astype(f32) * lax.rsqrt(var + eps)
    shift = beta.reshape(F, 1).astype(f32) - mean * scale
    # TODO(synk): BatchNorm2d training mode also updates running_mean/running_var buffers;
    # that module state is not produced here (forward output is unaffected).

    # ---- pass 2: fused normalize + LeakyReLU -------------------------------------------
    out_flat = pl.pallas_call(
        functools.partial(_bn_lrelu_kernel, neg_slope=neg_slope),
        out_shape=jax.ShapeDtypeStruct((N, F, HW), f32),
        grid=(N, n_hw),
        in_specs=[pl.BlockSpec((None, F, bhw), lambda n, t: (n, 0, t)),
                  pl.BlockSpec((F, 1), lambda n, t: (0, 0)),
                  pl.BlockSpec((F, 1), lambda n, t: (0, 0))],
        out_specs=pl.BlockSpec((None, F, bhw), lambda n, t: (n, 0, t)),
        compiler_params=parallel2,
    )(conv_flat, scale, shift)

    # (N, F, HW) is already flattened NCHW -> just reshape, no transpose.
    return out_flat.reshape(N, F, H_out, W_out)


def _reference_forward(x_nchw, w_oihw, conv_bias, gamma, beta, *,
                       padding, dilation, eps=1e-5, neg_slope=0.01):
    """Pure-JAX reference mirroring the PyTorch forward in training mode (bias included)."""
    conv = lax.conv_general_dilated(
        x_nchw, w_oihw, window_strides=(1, 1),
        padding=[(padding, padding), (padding, padding)],
        rhs_dilation=(dilation, dilation),
        dimension_numbers=("NCHW", "OIHW", "NCHW"),
    ) + conv_bias[None, :, None, None]
    mean = jnp.mean(conv, axis=(0, 2, 3), keepdims=True)
    var = jnp.mean((conv - mean) ** 2, axis=(0, 2, 3), keepdims=True)
    y = (conv - mean) * lax.rsqrt(var + eps) * gamma[None, :, None, None] \
        + beta[None, :, None, None]
    return jnp.where(y > 0, y, neg_slope * y)


if __name__ == "__main__":
    # Module config (matches EntryBlock(__init__) semantics).
    input_shape = (2, 4, 16, 16)   # (N, C, H, W)
    num_filters = 8
    kernel_size = 3
    padding = 1
    dilation = 1
    use_bias = True

    N, C, H, W = input_shape

    key = jax.random.PRNGKey(0)
    k_x, k_w, k_b, k_g, k_be = jax.random.split(key, 5)

    x = jax.random.normal(k_x, input_shape, dtype=jnp.float32)
    w = jax.random.normal(k_w, (num_filters, C, kernel_size, kernel_size),
                          dtype=jnp.float32) * 0.1
    b = (jax.random.normal(k_b, (num_filters,), dtype=jnp.float32) * 0.1
         if use_bias else jnp.zeros((num_filters,), jnp.float32))
    gamma = jnp.ones((num_filters,), jnp.float32) \
        + 0.1 * jax.random.normal(k_g, (num_filters,), dtype=jnp.float32)
    beta = 0.1 * jax.random.normal(k_be, (num_filters,), dtype=jnp.float32)

    out = entry_block_forward(x, w, b, gamma, beta,
                              padding=padding, dilation=dilation)
    out = jax.block_until_ready(out)

    ref = _reference_forward(x, w, b, gamma, beta,
                             padding=padding, dilation=dilation)
    ref = jax.block_until_ready(ref)

    assert out.shape == (N, num_filters, H, W), out.shape
    assert jnp.allclose(out, ref, atol=2e-3, rtol=2e-3), \
        float(jnp.max(jnp.abs(out - ref)))

    print("KERNEL_OK")
</pallas_src>

<mosaic_0001>
module attributes {stable_mosaic.version = 11 : i64} {
  func.func @_conv_stats_kernel(%arg0: i32, %arg1: i32, %arg2: memref<1x36x256xf32, #tpu.memory_space<vmem>>, %arg3: memref<8x36xf32, #tpu.memory_space<vmem>>, %arg4: memref<1x8x256xf32, #tpu.memory_space<vmem>>, %arg5: memref<1x1x8x2xf32, #tpu.memory_space<vmem>>) attributes {dimension_semantics = [#tpu.dimension_semantics<parallel>, #tpu.dimension_semantics<parallel>], iteration_bounds = array<i64: 2, 1>, scalar_prefetch = 0 : i64, scratch_operands = 0 : i64, tpu.core_type = #tpu.core_type<tc>, window_params = [{transform_indices = @transform_0, window_bounds = array<i64: 1, 36, 256>}, {pipeline_mode = #tpu.pipeline_mode<synchronous>, transform_indices = @transform_1, window_bounds = array<i64: 8, 36>}, {transform_indices = @transform_2, window_bounds = array<i64: 1, 8, 256>}, {transform_indices = @transform_3, window_bounds = array<i64: 1, 1, 8, 2>}]} {
    %c0 = arith.constant 0 : index
    %c0_0 = arith.constant 0 : index
    %0 = vector.load %arg3[%c0, %c0_0] : memref<8x36xf32, #tpu.memory_space<vmem>>, vector<8x36xf32>
    %c0_1 = arith.constant 0 : index
    %c0_2 = arith.constant 0 : index
    %c0_3 = arith.constant 0 : index
    %1 = vector.load %arg2[%c0_1, %c0_2, %c0_3] : memref<1x36x256xf32, #tpu.memory_space<vmem>>, vector<1x36x256xf32>
    %2 = vector.shape_cast %1 : vector<1x36x256xf32> to vector<36x256xf32>
    %cst = arith.constant dense<0.000000e+00> : vector<8x256xf32>
    %3 = tpu.matmul %0, %2, %cst {dimension_numbers = #tpu.dot_dimension_numbers<[1], [0], [0], [1], [0, 0, 1, 1], [], []>} : vector<8x36xf32>, vector<36x256xf32>, vector<8x256xf32> -> vector<8x256xf32>
    %c0_4 = arith.constant 0 : index
    %c0_5 = arith.constant 0 : index
    %c0_6 = arith.constant 0 : index
    %4 = vector.load %arg4[%c0_4, %c0_5, %c0_6] : memref<1x8x256xf32, #tpu.memory_space<vmem>>, vector<1x8x256xf32>
    %5 = vector.shape_cast %4 : vector<1x8x256xf32> to vector<8x256xf32>
    %6 = vector.shape_cast %3 : vector<8x256xf32> to vector<1x8x256xf32>
    tpu.vector_store %arg4[%c0_4, %c0_5, %c0_6], %6 {strides = array<i32>} : memref<1x8x256xf32, #tpu.memory_space<vmem>>, vector<1x8x256xf32>,
    %cst_7 = arith.constant dense<0.000000e+00> : vector<8xf32>
    %7 = vector.multi_reduction <add>, %3, %cst_7 [1] : vector<8x256xf32> to vector<8xf32>
    %8 = vector.shape_cast %7 : vector<8xf32> to vector<8x1xf32>
    %9 = arith.mulf %3, %3 : vector<8x256xf32>
    %cst_8 = arith.constant dense<0.000000e+00> : vector<8xf32>
    %10 = vector.multi_reduction <add>, %9, %cst_8 [1] : vector<8x256xf32> to vector<8xf32>
    %11 = vector.shape_cast %10 : vector<8xf32> to vector<8x1xf32>
    %12 = tpu.concatenate %8, %11 in 1 : vector<8x1xf32>, vector<8x1xf32> -> vector<8x2xf32>
    %c0_9 = arith.constant 0 : index
    %c0_10 = arith.constant 0 : index
    %c0_11 = arith.constant 0 : index
    %c0_12 = arith.constant 0 : index
    %13 = vector.load %arg5[%c0_9, %c0_10, %c0_11, %c0_12] : memref<1x1x8x2xf32, #tpu.memory_space<vmem>>, vector<1x1x8x2xf32>
    %14 = vector.shape_cast %13 : vector<1x1x8x2xf32> to vector<8x2xf32>
    %15 = vector.shape_cast %12 : vector<8x2xf32> to vector<1x1x8x2xf32>
    tpu.vector_store %arg5[%c0_9, %c0_10, %c0_11, %c0_12], %15 {strides = array<i32>} : memref<1x1x8x2xf32, #tpu.memory_space<vmem>>, vector<1x1x8x2xf32>,
    return
  }
  func.func @transform_0(%arg0: i32, %arg1: i32) -> (i32, i32, i32) {
    %c0_i32 = arith.constant 0 : i32
    %c0_i32_0 = arith.constant 0 : i32
    return %arg0, %c0_i32, %arg1 : i32, i32, i32
  }
  func.func @transform_1(%arg0: i32, %arg1: i32) -> (i32, i32) {
    %c0_i32 = arith.constant 0 : i32
    %c0_i32_0 = arith.constant 0 : i32
    %c0_i32_1 = arith.constant 0 : i32
    return %c0_i32, %c0_i32_0 : i32, i32
  }
  func.func @transform_2(%arg0: i32, %arg1: i32) -> (i32, i32, i32) {
    %c0_i32 = arith.constant 0 : i32
    %c0_i32_0 = arith.constant 0 : i32
    return %arg0, %c0_i32, %arg1 : i32, i32, i32
  }
  func.func @transform_3(%arg0: i32, %arg1: i32) -> (i32, i32, i32, i32) {
    %c0_i32 = arith.constant 0 : i32
    %c0_i32_0 = arith.constant 0 : i32
    %c0_i32_1 = arith.constant 0 : i32
    return %arg0, %arg1, %c0_i32, %c0_i32_0 : i32, i32, i32, i32
  }
}

</mosaic_0001>

<llo_original>
// kernel: tpu_custom_call.1
$region0: #{tpu_custom_call.1}
  #allocation0 [shape = 'u32[]', space=smem, size = 0x4, offset = 0x4, fixed_abs, tag = 'smem constant byte address 0x4 - core index']
  #allocation1 [shape = 'u32[144,128]{1,0:T(1,128)}', space=vmem, size = 0x12000, scoped, tag = 'internal scratch']
  %s0 = inlined_call_operand.vmem [shape: f32[2,36,256], index: 0, kind: input, shape index: {}]
  %s1 = inlined_call_operand.vmem [shape: f32[8,36], index: 1, kind: input, shape index: {}]
  %s2 = inlined_call_operand.hbm [shape: f32[2,8,256], index: 2, kind: output, shape index: {0}]
  %s3 = inlined_call_operand.vmem [shape: f32[2,1,8,2], index: 3, kind: output, shape index: {1}]
  %4 = xla_tuple %s2, %s3
  %s5 = sld [smem:[#allocation0]]
  $region49: #{tpu_custom_call.1} parent=0
    _
  %s7 = ssub.s32 1, %s5
  %s8 = scalar_select 0, %s7, %s5
  $region1: #{tpu_custom_call.1} parent=0
    #allocation2 [shape = 'u8[16384]{0}', space=vmem, size = 0x4000, scoped, tag = 'output window, operand 0']
    #allocation3 [shape = 's32[2]{0}', space=sflag, size = 0x8, scoped, tag = 'scoped memory for tpu_custom_call.1']
    %9 = vsyncpa [#allocation3], 0
    %s10 = scalar_lea.sflag [#allocation3], 1
    %11 = vsyncpa %s10, 0
    loop: start=0, step=1, limit=4
    $region2: #{tpu_custom_call.1} parent=1 // loop_pre_header
      _
    $region3: #{tpu_custom_call.1} parent=1 // loop_header
      %s13 = sphi 0, %s17
      %p14 = scmp.ge.s32.totalorder %s13, 4
      %s20 = sphi 0, %s32
      %s21 = sphi 0, %s28
      %s22 = sphi 0, %s20
      %s23 = sphi 0, %s21
      %s24 = sphi 0, %s22
      %s25 = sphi 0, %s23
      %s37 = sphi 0, %s39
      %s40 = sphi 0, %s37
      %s41 = sphi 0, %s40
      %s57 = sphi 0, %s41
      %s61 = sphi 0, %s61
      %s63 = sphi 0, %s61
      %s64 = sphi 0, %s63
      %s78 = sphi 0, %s64
      %s86 = sphi 0, %s88
      %s89 = sphi 0, %s86
      %s90 = sphi 0, %s89
      %s106 = sphi 0, %s90
      %s114 = sphi 0, %s116
      %s117 = sphi 0, %s114
      %s118 = sphi 0, %s117
      %s134 = sphi 0, %s118
    $region4: #{tpu_custom_call.1} parent=1 // loop_header_branch
      %16 = sbr.rel (%p14) target = $region8
    $region5: #{tpu_custom_call.1} parent=1 // loop_body
      %s18 = ssub.s32 %s13, 1
      %s19 = ssub.s32 %s13, 2
      %s26 = sadd.s32 1, %s21
      %p27 = scmp.ge.s32.totalorder %s26, 1
      %s28 = scalar_select %p27, 0, %s26
      %s29 = sadd.s32 1, %s20
      %s30 = scalar_select %p27, %s29, %s20
      %p31 = scmp.ge.s32.totalorder %s30, 2
      %s32 = scalar_select %p31, 0, %s30
      %s33 = ssub.s32 %s20, %s32
      %s34 = ssub.s32 %s21, %s28
      %s35 = sor.u32 %s33, %s34
      %p36 = scmp.eq.s32.totalorder %s35, 0
      %s38 = sadd.s32 %s37, 1
      %s39 = scalar_select %p36, %s37, %s38
      %p42 = pneg %p36
      %p43 = scmp.eq.s32.totalorder %s13, 1
      %p44 = por %p42, %p43
      %p45 = scmp.ne.s32.totalorder %s37, %s40
      %p46 = scmp.eq.s32.totalorder %s13, 0
      %p47 = por %p45, %p46
      %p48 = scmp.ne.s32.totalorder %s37, %s40
      %p49 = scmp.eq.s32.totalorder %s18, 1
      %p50 = por %p48, %p49
      %p51 = scmp.ne.s32.totalorder %s40, %s41
      %p52 = scmp.eq.s32.totalorder %s18, 0
      %p53 = por %p51, %p52
      %p54 = scmp.ne.s32.totalorder %s40, %s41
      %p55 = scmp.eq.s32.totalorder %s19, 1
      %p56 = por %p54, %p55
      %p58 = scmp.ne.s32.totalorder %s41, %s57
      %p59 = scmp.eq.s32.totalorder %s19, 0
      %p60 = por %p58, %p59
      %s62 = sadd.s32 %s61, 1
      %p65 = scmp.eq.s32.totalorder %s13, 1
      %p66 = scmp.ne.s32.totalorder %s61, %s63
      %p67 = scmp.eq.s32.totalorder %s13, 0
      %p68 = por %p66, %p67
      %p69 = scmp.ne.s32.totalorder %s61, %s63
      %p70 = scmp.eq.s32.totalorder %s18, 1
      %p71 = por %p69, %p70
      %p72 = scmp.ne.s32.totalorder %s63, %s64
      %p73 = scmp.eq.s32.totalorder %s18, 0
      %p74 = por %p72, %p73
      %p75 = scmp.ne.s32.totalorder %s63, %s64
      %p76 = scmp.eq.s32.totalorder %s19, 1
      %p77 = por %p75, %p76
      %p79 = scmp.ne.s32.totalorder %s64, %s78
      %p80 = scmp.eq.s32.totalorder %s19, 0
      %p81 = por %p79, %p80
      %s82 = ssub.s32 %s20, %s32
      %s83 = ssub.s32 %s21, %s28
      %s84 = sor.u32 %s82, %s83
      %p85 = scmp.eq.s32.totalorder %s84, 0
      %s87 = sadd.s32 %s86, 1
      %s88 = scalar_select %p85, %s86, %s87
      %p91 = pneg %p85
      %p92 = scmp.eq.s32.totalorder %s13, 1
      %p93 = por %p91, %p92
      %p94 = scmp.ne.s32.totalorder %s86, %s89
      %p95 = scmp.eq.s32.totalorder %s13, 0
      %p96 = por %p94, %p95
      %p97 = scmp.ne.s32.totalorder %s86, %s89
      %p98 = scmp.eq.s32.totalorder %s18, 1
      %p99 = por %p97, %p98
      %p100 = scmp.ne.s32.totalorder %s89, %s90
      %p101 = scmp.eq.s32.totalorder %s18, 0
      %p102 = por %p100, %p101
      %p103 = scmp.ne.s32.totalorder %s89, %s90
      %p104 = scmp.eq.s32.totalorder %s19, 1
      %p105 = por %p103, %p104
      %p107 = scmp.ne.s32.totalorder %s90, %s106
      %p108 = scmp.eq.s32.totalorder %s19, 0
      %p109 = por %p107, %p108
      %s110 = ssub.s32 %s20, %s32
      %s111 = ssub.s32 %s21, %s28
      %s112 = sor.u32 %s110, %s111
      %p113 = scmp.eq.s32.totalorder %s112, 0
      %s115 = sadd.s32 %s114, 1
      %s116 = scalar_select %p113, %s114, %s115
      %p119 = pneg %p113
      %p120 = scmp.eq.s32.totalorder %s13, 1
      %p121 = por %p119, %p120
      %p122 = scmp.ne.s32.totalorder %s114, %s117
      %p123 = scmp.eq.s32.totalorder %s13, 0
      %p124 = por %p122, %p123
      %p125 = scmp.ne.s32.totalorder %s114, %s117
      %p126 = scmp.eq.s32.totalorder %s18, 1
      %p127 = por %p125, %p126
      %p128 = scmp.ne.s32.totalorder %s117, %s118
      %p129 = scmp.eq.s32.totalorder %s18, 0
      %p130 = por %p128, %p129
      %p131 = scmp.ne.s32.totalorder %s117, %s118
      %p132 = scmp.eq.s32.totalorder %s19, 1
      %p133 = por %p131, %p132
      %p135 = scmp.ne.s32.totalorder %s118, %s134
      %p136 = scmp.eq.s32.totalorder %s19, 0
      %p137 = por %p135, %p136
      %p138 = scmp.le.s32.totalorder 1, %s13
      %p139 = scmp.lt.s32.totalorder %s13, 3
      %p140 = pnand %p138, %p139
      %p141 = pneg %p140
      // Predicated region
      $region9: #{tpu_custom_call.1} parent=5 // pred_check
        _
      $region10: #{tpu_custom_call.1} parent=5 // pred_check_branch
        %143 = sbr.rel (%p140) target = $region12
      $region11: #{tpu_custom_call.1} parent=5 // pred_region
        %s144 = ssub.s32 %s13, 1
        // Predicated region
        $region13: #{tpu_custom_call.1} parent=11 // pred_check
          %p145 = pneg %p74
        $region14: #{tpu_custom_call.1} parent=11 // pred_check_branch
          %147 = sbr.rel (%p145) target = $region16
        $region15: #{tpu_custom_call.1} parent=11 // pred_region
          _
        $region16: #{tpu_custom_call.1} parent=11 // pred_fallthru
          _
      $region12: #{tpu_custom_call.1} parent=5 // pred_fallthru
        _
      %p148 = scmp.lt.s32.totalorder %s13, 2
      // Predicated region
      $region17: #{tpu_custom_call.1} parent=5 // pred_check
        %p149 = pneg %p148
      $region18: #{tpu_custom_call.1} parent=5 // pred_check_branch
        %151 = sbr.rel (%p149) target = $region20
      $region19: #{tpu_custom_call.1} parent=5 // pred_region
        // Predicated region
        $region21: #{tpu_custom_call.1} parent=19 // pred_check
          %p152 = pneg %p47
        $region22: #{tpu_custom_call.1} parent=19 // pred_check_branch
          %154 = sbr.rel (%p152) target = $region24
        $region23: #{tpu_custom_call.1} parent=19 // pred_region
          %s155 = smul.u32 2, %s21
          %p156 = scmp.lt.s32.totalorder %s20, 1
          %s157 = scalar_select %p156, %s20, 1
          %p158 = scmp.lt.s32.totalorder %s155, 1
          %s159 = scalar_select %p158, %s155, 1
          %s160 = smul.addr %s157, 10
          %s161 = sadd.s32 %s159, %s160
          %s162 = smul.addr %s161, 8
          %s163 = scalar_lea.vmem %s0, %s162
          %s164 = smul.u32 2, %s21
        $region24: #{tpu_custom_call.1} parent=19 // pred_fallthru
          _
      $region20: #{tpu_custom_call.1} parent=5 // pred_fallthru
        _
      %p165 = scmp.le.s32.totalorder 1, %s13
      %p166 = scmp.lt.s32.totalorder %s13, 3
      %p167 = pnand %p165, %p166
      %p168 = pneg %p167
      // Predicated region
      $region25: #{tpu_custom_call.1} parent=5 // pred_check
        _
      $region26: #{tpu_custom_call.1} parent=5 // pred_check_branch
        %170 = sbr.rel (%p167) target = $region28
      $region27: #{tpu_custom_call.1} parent=5 // pred_region
        %s171 = ssub.s32 %s13, 1
        %s172 = smul.u32 2, %s23
        %p173 = scmp.lt.s32.totalorder %s22, 1
        %s174 = scalar_select %p173, %s22, 1
        %p175 = scmp.lt.s32.totalorder %s172, 1
        %s176 = scalar_select %p175, %s172, 1
        %s177 = smul.addr %s174, 10
        %s178 = sadd.s32 %s176, %s177
        %s179 = smul.addr %s178, 8
        %s180 = scalar_lea.vmem %s0, %s179
        %p181 = pneg %p53
        %p182 = pneg %p50
        %p183 = pneg %p74
        %p184 = pneg %p71
        %p185 = pneg %p102
        %p186 = pneg %p99
        %s187 = sand.u32 %s89, 1
        %s188 = scalar_lea.sflag [#allocation3], %s187
        %s189 = sand.u32 %s89, 1
        %s190 = smul.addr %s189, 16
        %s191 = scalar_lea.vmem [#allocation2], %s190
        %p192 = pneg %p130
        %p193 = pneg %p127
        %p194 = scmp.lt.s32.totalorder %s22, 1
        %s195 = scalar_select %p194, %s22, 1
        %p196 = scmp.lt.s32.totalorder %s23, 0
        %s197 = scalar_select %p196, %s23, 0
        %s198 = sadd.s32 %s197, %s195
        %s199 = smul.addr %s198, 8
        %s200 = scalar_lea.vmem %s3, %s199
        %s201 = smul.u32 2, %s23
        %p202 = scmp.lt.s32.totalorder %s22, 1
        %s203 = scalar_select %p202, %s22, 1
        %p204 = scmp.lt.s32.totalorder %s201, 1
        %s205 = scalar_select %p204, %s201, 1
        %s206 = smul.addr %s203, 10
        %s207 = sadd.s32 %s205, %s206
        %s208 = smul.addr %s207, 8
        %s209 = scalar_lea.vmem %s0, %s208
        %s210 = smul.u32 2, %s23
        %s211 = smul.u32 2, %s23
        %p212 = scmp.lt.s32.totalorder %s22, 1
        %s213 = scalar_select %p212, %s22, 1
        %p214 = scmp.lt.s32.totalorder %s23, 0
        %s215 = scalar_select %p214, %s23, 0
        %s216 = sadd.s32 %s215, %s213
        %s217 = smul.addr %s216, 8
        %s218 = scalar_lea.vmem %s3, %s217
        %v219 = vld [vmem:[%s1] sm:$0xff]
        %v220 = vld [vmem:[%s209] sm:$0xff]
        %v221 = vld [vmem:[%s209 + $0x8] sm:$0xff]
        %v222 = vld [vmem:[%s209 + $0x10] sm:$0xff]
        %v223 = vld [vmem:[%s209 + $0x18] sm:$0xff]
        %v224 = vld [vmem:[%s209 + $0x20] sm:$0xff]
        %v225 = vld [vmem:[%s209 + $0x28] sm:$0xff]
        %v226 = vld [vmem:[%s209 + $0x30] sm:$0xff]
        %v227 = vld [vmem:[%s209 + $0x38] sm:$0xff]
        %v228 = vld [vmem:[%s209 + $0x40] sm:$0xf]
        %v229 = vld [vmem:[%s209 + $0x48] sm:$0xf]
        %vm230 = vcmask 293888
        %v232 = vsel %vm230, %v219, 0
        %vm234 = vcmask 1043456
        %v236 = vsel %vm234, %v228, 0
        %v239 = vsel %vm234, %v229, 0
        %241 = vmatprep.subr.mxu0 %v221
        %242 = vmatpush1.msra.mxu0 %v220
        %243 = vmatprep.subr.mxu0 %v223
        %244 = vmatpush1.msra.mxu0 %v222
        %245 = vmatprep.subr.mxu0 %v225
        %246 = vmatpush1.msra.mxu0 %v224
        %247 = vmatprep.subr.mxu0 %v227
        %248 = vmatpush1.msra.mxu0 %v226
        %249 = vmatprep.subr.mxu0 %v239
        %250 = vmatpush1.msra.mxu0 %v236
        %251 = vmatprep.subr.mxu0 0.0
        %252 = vmatpush1.msra.mxu0 0.0
        %253 = vmatprep.subr.mxu0 0.0
        %254 = vmatpush1.msra.mxu0 0.0
        %255 = vmatprep.subr.mxu0 0.0
        %256 = vmatpush1.msra.mxu0 0.0
        %257 = vmatprep.subr.mxu0 0.0
        %258 = vmatpush1.msra.mxu0 0.0
        %259 = vmatprep.subr.mxu0 0.0
        %260 = vmatpush1.msra.mxu0 0.0
        %261 = vmatprep.subr.mxu0 0.0
        %262 = vmatpush1.msra.mxu0 0.0
        %263 = vmatprep.subr.mxu0 0.0
        %264 = vmatpush1.msra.mxu0 0.0
        %265 = vmatprep.subr.mxu0 0.0
        %266 = vmatpush1.msra.mxu0 0.0
        %267 = vmatprep.subr.mxu0 0.0
        %268 = vmatpush1.msra.mxu0 0.0
        %269 = vmatprep.subr.mxu0 0.0
        %270 = vmatpush1.msra.mxu0 0.0
        %271 = vmatprep.subr.mxu0 0.0
        %272 = vmatpush1.msra.mxu0 0.0
        %273 = vmatprep.subr.mxu0 0.0
        %274 = vmatpush1.msra.mxu0 0.0
        %275 = vmatprep.subr.mxu0 0.0
        %276 = vmatpush1.msra.mxu0 0.0
        %277 = vmatprep.subr.mxu0 0.0
        %278 = vmatpush1.msra.mxu0 0.0
        %279 = vmatprep.subr.mxu0 0.0
        %280 = vmatpush1.msra.mxu0 0.0
        %281 = vmatprep.subr.mxu0 0.0
        %282 = vmatpush1.msra.mxu0 0.0
        %283 = vmatprep.subr.mxu0 0.0
        %284 = vmatpush1.msra.mxu0 0.0
        %285 = vmatprep.subr.mxu0 0.0
        %286 = vmatpush1.msra.mxu0 0.0
        %287 = vmatprep.subr.mxu0 0.0
        %288 = vmatpush1.msra.mxu0 0.0
        %289 = vmatprep.subr.mxu0 0.0
        %290 = vmatpush1.msra.mxu0 0.0
        %291 = vmatprep.subr.mxu0 0.0
        %292 = vmatpush1.msra.mxu0 0.0
        %293 = vmatprep.subr.mxu0 0.0
        %294 = vmatpush1.msra.mxu0 0.0
        %295 = vmatprep.subr.mxu0 0.0
        %296 = vmatpush1.msra.mxu0 0.0
        %297 = vmatprep.subr.mxu0 0.0
        %298 = vmatpush1.msra.mxu0 0.0
        %299 = vmatprep.subr.mxu0 0.0
        %300 = vmatpush1.msra.mxu0 0.0
        %301 = vmatprep.subr.mxu0 0.0
        %302 = vmatpush1.msra.mxu0 0.0
        %303 = vmatprep.subr.mxu0 0.0
        %304 = vmatpush1.msra.mxu0 0.0
        %305 = vmatprep.mubr.f32.mxu0 0.0
        %306 = vmatmul.mubr.f32.gmra.mrb[0].mxu0 %v232
        %v307 = vpop.f32.mrb[0].mxu0
        %v308 = vadd.f32 0.0, %v307
        %v309 = vpop.f32.mrb[0].mxu0
        %v310 = vadd.f32 0.0, %v309
        %311 = vdwg.mxu0
        %312 = vst [vmem:[%s191] sm:$0xff] %v308
        %313 = vst [vmem:[%s191 + $0x8] sm:$0xff] %v310
        %v314 = vadd.f32 %v308, %v310
        %315 = vadd.xlane.f32.xlu0 %v314
        %v316 = vpop.xlane.xlu0 %315
        %v317 = vmul.f32 %v308, %v308
        %v318 = vmul.f32 %v310, %v310
        %v319 = vadd.f32 %v317, %v318
        %320 = vadd.xlane.f32.xlu0 %v319
        %v321 = vpop.xlane.xlu0 %320
        %vm322 = vcmask 7168
        %v323 = vsel %vm322, %v316, %v321
        %vm324 = vcmask 15360
        %325 = vst.msk [vmem:[%s218] sm:$0xff] %vm324, %v323
        %s326 = sand.u32 %s89, 1
        %s327 = scalar_lea.sflag [#allocation3], %s326
        %s328 = sand.u32 %s89, 1
        %s329 = smul.addr %s328, 16
        %s330 = scalar_lea.vmem [#allocation2], %s329
        %p331 = scmp.lt.s32.totalorder %s22, 1
        %s332 = scalar_select %p331, %s22, 1
        %p333 = scmp.lt.s32.totalorder %s23, 0
        %s334 = scalar_select %p333, %s23, 0
        %s335 = sadd.s32 %s334, %s332
        %s336 = smul.addr %s335, 8
        %s337 = scalar_lea.vmem %s3, %s336
        // Predicated region
        $region29: #{tpu_custom_call.1} parent=27 // pred_check
          %p338 = pneg %p99
        $region30: #{tpu_custom_call.1} parent=27 // pred_check_branch
          %340 = sbr.rel (%p338) target = $region32
        $region31: #{tpu_custom_call.1} parent=27 // pred_region
          %s341 = smul.u32 2, %s23
          %s343 = ssub.s32 256, 256
          %344 = vsyncadd %s327, %s343
          %s345 = smul.addr %s22, 2
          %s346 = sadd.s32 %s341, %s345
          %s347 = smul.addr %s346, 128
          %s348 = scalar_lea.hbm %s2, %s347
          %s350 = sshll.u32 %s330, 4
          %s351 = int_to_ptr.vmem [resolvable:$true] %s350
          %353 = dma.vmem_to_hbm [thread:$0]  %s351, 256, %s348, %s327
        $region32: #{tpu_custom_call.1} parent=27 // pred_fallthru
          _
        // Predicated region
        $region33: #{tpu_custom_call.1} parent=27 // pred_check
          %p354 = pneg %p127
        $region34: #{tpu_custom_call.1} parent=27 // pred_check_branch
          %356 = sbr.rel (%p354) target = $region36
        $region35: #{tpu_custom_call.1} parent=27 // pred_region
          _
        $region36: #{tpu_custom_call.1} parent=27 // pred_fallthru
          _
      $region28: #{tpu_custom_call.1} parent=5 // pred_fallthru
        _
      %p357 = scmp.le.s32.totalorder 2, %s13
      // Predicated region
      $region37: #{tpu_custom_call.1} parent=5 // pred_check
        %p358 = pneg %p357
      $region38: #{tpu_custom_call.1} parent=5 // pred_check_branch
        %360 = sbr.rel (%p358) target = $region40
      $region39: #{tpu_custom_call.1} parent=5 // pred_region
        %s361 = ssub.s32 %s13, 2
        // Predicated region
        $region41: #{tpu_custom_call.1} parent=39 // pred_check
          %p362 = pneg %p105
        $region42: #{tpu_custom_call.1} parent=39 // pred_check_branch
          %364 = sbr.rel (%p362) target = $region44
        $region43: #{tpu_custom_call.1} parent=39 // pred_region
          %s365 = sand.u32 %s90, 1
          %s366 = scalar_lea.sflag [#allocation3], %s365
          %s367 = sand.u32 %s90, 1
          %s368 = smul.addr %s367, 16
          %s369 = scalar_lea.vmem [#allocation2], %s368
          %370 = dma.done %s366, 256
        $region44: #{tpu_custom_call.1} parent=39 // pred_fallthru
          _
        // Predicated region
        $region45: #{tpu_custom_call.1} parent=39 // pred_check
          %p371 = pneg %p133
        $region46: #{tpu_custom_call.1} parent=39 // pred_check_branch
          %373 = sbr.rel (%p371) target = $region48
        $region47: #{tpu_custom_call.1} parent=39 // pred_region
          %p374 = scmp.lt.s32.totalorder %s24, 1
          %s375 = scalar_select %p374, %s24, 1
          %p376 = scmp.lt.s32.totalorder %s25, 0
          %s377 = scalar_select %p376, %s25, 0
          %s378 = sadd.s32 %s377, %s375
          %s379 = smul.addr %s378, 8
          %s380 = scalar_lea.vmem %s3, %s379
        $region48: #{tpu_custom_call.1} parent=39 // pred_fallthru
          _
      $region40: #{tpu_custom_call.1} parent=5 // pred_fallthru
        _
    $region6: #{tpu_custom_call.1} parent=1 // loop_footer
      %s17 = sadd.s32 1, %s13
    $region7: #{tpu_custom_call.1} parent=1 // loop_footer_branch
      %12 = sbr.rel target = $region3
    $region8: #{tpu_custom_call.1} parent=1 // loop_exit
      _
    %381 = vsyncpa [#allocation3], 1
    %s382 = scalar_lea.sflag [#allocation3], 1
    %383 = vsyncpa %s382, 1

</llo_original>
